<compile_context>
chip_gen: v7x
topology: tpu7x:2x2x1
jax: 0.10.0
libtpu: 0.0.40
codegen_flags: <defaults>
</compile_context>

<pallas_src>
import jax
import jax.numpy as jnp
from jax import lax
from jax.experimental import pallas as pl
from jax.experimental.pallas import tpu as pltpu

KSIZE = 7
PAD = (KSIZE - 1) // 2


def _spatial_attention_kernel(bn_ref, kop_ref, x_ref, o_ref):
    """One grid step: NB batch elements, all channels, flattened spatial dim.

    bn_ref : SMEM f32[2]               folded BatchNorm (scale, shift)
    kop_ref: VMEM f32[2, HW, HW]       conv-as-matmul operator (max ch, mean ch)
    x_ref  : VMEM x.dtype[NB, C, HW]   input block
    o_ref  : VMEM x.dtype[NB, C, HW]   output block
    """
    x = x_ref[...]                                        # stays in input dtype

    # Channel-wise max / mean -> small (NB, HW) maps; only these go to f32.
    ch_max = jnp.max(x, axis=1).astype(jnp.float32)       # (NB, HW)
    ch_mean = jnp.mean(x.astype(jnp.float32), axis=1)     # (NB, HW), f32 accum

    # 7x7 "same" conv of the 2-channel [max, mean] map as two MXU matmuls
    # against the precomputed banded operator (zero padding encoded in K).
    logits = jnp.dot(ch_max, kop_ref[0], preferred_element_type=jnp.float32)
    logits = logits + jnp.dot(ch_mean, kop_ref[1],
                              preferred_element_type=jnp.float32)

    # Folded BatchNorm2d(1) (eval mode) + sigmoid gate, then back to x dtype.
    gate = jax.nn.sigmoid(logits * bn_ref[0] + bn_ref[1])  # (NB, HW) f32
    gate = gate.astype(x.dtype)

    # Gate multiply + writeback in the input dtype, broadcast over channels.
    o_ref[...] = x * gate[:, None, :]


def _conv_as_matmul_operator(conv_w, H, W):
    """Dense conv-as-matmul operator.

    K[c, i*W + j, h*W + w] = conv_w[0, c, i - h + PAD, j - w + PAD]
    (zero outside the 7x7 window), so that for a flattened 1-channel map m:
        conv2d_same(m)[h, w] == (m_flat @ K[c])[h*W + w]
    which matches PyTorch Conv2d cross-correlation with 'same' zero padding.
    """
    wgt = conv_w[0].astype(jnp.float32)                            # (2, 7, 7)
    dy = jnp.arange(H)[:, None] - jnp.arange(H)[None, :] + PAD     # (H, H) [i, h]
    dx = jnp.arange(W)[:, None] - jnp.arange(W)[None, :] + PAD     # (W, W) [j, w]
    vy = (dy >= 0) & (dy < KSIZE)
    vx = (dx >= 0) & (dx < KSIZE)
    k = wgt[:, jnp.clip(dy, 0, KSIZE - 1), :]                      # (2, H, H, 7)
    k = k[:, :, :, jnp.clip(dx, 0, KSIZE - 1)]                     # (2, H, H, W, W)
    mask = vy[:, :, None, None] & vx[None, None, :, :]             # (H, H, W, W)
    k = jnp.where(mask[None], k, 0.0)
    # (c, i, h, j, w) -> (c, i, j, h, w) -> (c, H*W, H*W)
    return jnp.transpose(k, (0, 1, 3, 2, 4)).reshape(2, H * W, H * W)


def spatial_attention(x, conv_w, bn_gamma, bn_beta, bn_mean, bn_var, eps=1e-5,
                      vmem_budget_bytes=8 * 1024 * 1024):
    N, C, H, W = x.shape
    assert conv_w.shape == (1, 2, KSIZE, KSIZE)
    HW = H * W

    # Fold BatchNorm into a scalar scale/shift (eval-mode running stats).
    scale = bn_gamma.astype(jnp.float32) / jnp.sqrt(bn_var.astype(jnp.float32) + eps)
    shift = bn_beta.astype(jnp.float32) - bn_mean.astype(jnp.float32) * scale
    bn_params = jnp.concatenate([scale.reshape(-1), shift.reshape(-1)])  # (2,)

    kop = _conv_as_matmul_operator(conv_w, H, W)          # (2, HW, HW) f32

    # Lane-dense layout plumbing: fold the spatial dims into the lane axis.
    x2 = x.reshape(N, C, HW)

    # Block NB batch elements per grid step, budgeted against scoped VMEM
    # (in + out, double buffered) so each step moves big lane-dense tiles.
    per_batch = 2 * 2 * C * HW * x.dtype.itemsize
    NB = 1
    for cand in range(1, N + 1):
        if N % cand == 0 and cand * per_batch <= vmem_budget_bytes:
            NB = cand

    out = pl.pallas_call(
        _spatial_attention_kernel,
        out_shape=jax.ShapeDtypeStruct((N, C, HW), x.dtype),
        grid=(N // NB,),
        in_specs=[
            pl.BlockSpec(memory_space=pltpu.MemorySpace.SMEM),   # BN scale/shift
            pl.BlockSpec((2, HW, HW), lambda b: (0, 0, 0)),      # conv operator
            pl.BlockSpec((NB, C, HW), lambda b: (b, 0, 0)),      # x block
        ],
        out_specs=pl.BlockSpec((NB, C, HW), lambda b: (b, 0, 0)),
        compiler_params=pltpu.CompilerParams(
            dimension_semantics=("parallel",),
            vmem_limit_bytes=32 * 1024 * 1024,
        ),
    )(bn_params, kop, x2)
    return out.reshape(N, C, H, W)


def spatial_attention_ref(x, conv_w, bn_gamma, bn_beta, bn_mean, bn_var, eps=1e-5):
    """Pure-JAX reference matching the PyTorch forward."""
    s = jnp.concatenate(
        [jnp.max(x, axis=1, keepdims=True), jnp.mean(x, axis=1, keepdims=True)], axis=1
    )
    y = lax.conv_general_dilated(
        s, conv_w, window_strides=(1, 1),
        padding=((PAD, PAD), (PAD, PAD)),
        dimension_numbers=("NCHW", "OIHW", "NCHW"),
    )
    y = (y - bn_mean) / jnp.sqrt(bn_var + eps) * bn_gamma + bn_beta
    return x * jax.nn.sigmoid(y)


if __name__ == "__main__":
    key = jax.random.PRNGKey(0)
    kx, kw = jax.random.split(key)

    N, C, H, W = 2, 4, 16, 16
    # Inputs are quantized to bf16-exact grids so the correctness check is
    # independent of the MXU's f32 matmul precision mode.
    x = jax.random.normal(kx, (N, C, H, W), jnp.float32)
    x = jnp.round(x * 8.0) / 8.0
    conv_w = jax.random.normal(kw, (1, 2, KSIZE, KSIZE), jnp.float32) * 0.1
    conv_w = jnp.round(conv_w * 256.0) / 256.0

    bn_gamma = jnp.array([1.5], jnp.float32)
    bn_beta = jnp.array([0.1], jnp.float32)
    bn_mean = jnp.array([0.05], jnp.float32)
    bn_var = jnp.array([0.8], jnp.float32)

    out = spatial_attention(x, conv_w, bn_gamma, bn_beta, bn_mean, bn_var)
    out = jax.block_until_ready(out)

    ref = spatial_attention_ref(x, conv_w, bn_gamma, bn_beta, bn_mean, bn_var)
    assert out.shape == x.shape and out.dtype == x.dtype
    max_err = float(jnp.max(jnp.abs(out - ref)))
    assert jnp.allclose(out, ref, atol=1e-4, rtol=1e-4), f"max_err={max_err}"
    print("KERNEL_OK")
</pallas_src>

<mosaic_0001>
module attributes {stable_mosaic.version = 11 : i64} {
  func.func @_spatial_attention_kernel(%arg0: i32, %arg1: memref<2xf32, #tpu.memory_space<smem>>, %arg2: memref<2x256x256xf32, #tpu.memory_space<vmem>>, %arg3: memref<2x4x256xf32, #tpu.memory_space<vmem>>, %arg4: memref<2x4x256xf32, #tpu.memory_space<vmem>>) attributes {dimension_semantics = [#tpu.dimension_semantics<parallel>], iteration_bounds = array<i64: 1>, scalar_prefetch = 0 : i64, scratch_operands = 0 : i64, tpu.core_type = #tpu.core_type<tc>, window_params = [{transform_indices = @transform_0, window_bounds = array<i64: 2>}, {pipeline_mode = #tpu.pipeline_mode<synchronous>, transform_indices = @transform_1, window_bounds = array<i64: 2, 256, 256>}, {transform_indices = @transform_2, window_bounds = array<i64: 2, 4, 256>}, {transform_indices = @transform_3, window_bounds = array<i64: 2, 4, 256>}]} {
    %c0 = arith.constant 0 : index
    %c0_0 = arith.constant 0 : index
    %c0_1 = arith.constant 0 : index
    %0 = vector.load %arg3[%c0, %c0_0, %c0_1] : memref<2x4x256xf32, #tpu.memory_space<vmem>>, vector<2x4x256xf32>
    %cst = arith.constant dense<0xFF800000> : vector<2x256xf32>
    %1 = vector.multi_reduction <maximumf>, %0, %cst [1] : vector<2x4x256xf32> to vector<2x256xf32>
    %cst_2 = arith.constant dense<0.000000e+00> : vector<2x256xf32>
    %2 = vector.multi_reduction <add>, %0, %cst_2 [1] : vector<2x4x256xf32> to vector<2x256xf32>
    %cst_3 = arith.constant 4.000000e+00 : f32
    %3 = vector.broadcast %cst_3 : f32 to vector<2x256xf32>
    %4 = arith.divf %2, %3 : vector<2x256xf32>
    %c0_4 = arith.constant 0 : index
    %c0_5 = arith.constant 0 : index
    %c0_6 = arith.constant 0 : index
    %5 = vector.load %arg2[%c0_4, %c0_5, %c0_6] : memref<2x256x256xf32, #tpu.memory_space<vmem>>, vector<1x256x256xf32>
    %6 = vector.shape_cast %5 : vector<1x256x256xf32> to vector<256x256xf32>
    %cst_7 = arith.constant dense<0.000000e+00> : vector<2x256xf32>
    %7 = tpu.matmul %1, %6, %cst_7 {dimension_numbers = #tpu.dot_dimension_numbers<[1], [0], [0], [1], [0, 0, 1, 1], [], []>} : vector<2x256xf32>, vector<256x256xf32>, vector<2x256xf32> -> vector<2x256xf32>
    %c1 = arith.constant 1 : index
    %c0_8 = arith.constant 0 : index
    %c0_9 = arith.constant 0 : index
    %8 = vector.load %arg2[%c1, %c0_8, %c0_9] : memref<2x256x256xf32, #tpu.memory_space<vmem>>, vector<1x256x256xf32>
    %9 = vector.shape_cast %8 : vector<1x256x256xf32> to vector<256x256xf32>
    %cst_10 = arith.constant dense<0.000000e+00> : vector<2x256xf32>
    %10 = tpu.matmul %4, %9, %cst_10 {dimension_numbers = #tpu.dot_dimension_numbers<[1], [0], [0], [1], [0, 0, 1, 1], [], []>} : vector<2x256xf32>, vector<256x256xf32>, vector<2x256xf32> -> vector<2x256xf32>
    %11 = arith.addf %7, %10 : vector<2x256xf32>
    %c0_11 = arith.constant 0 : index
    %12 = memref.load %arg1[%c0_11] : memref<2xf32, #tpu.memory_space<smem>>
    %13 = vector.broadcast %12 : f32 to vector<2x256xf32>
    %14 = arith.mulf %11, %13 : vector<2x256xf32>
    %c1_12 = arith.constant 1 : index
    %15 = memref.load %arg1[%c1_12] : memref<2xf32, #tpu.memory_space<smem>>
    %16 = vector.broadcast %15 : f32 to vector<2x256xf32>
    %17 = arith.addf %14, %16 : vector<2x256xf32>
    %18 = arith.negf %17 : vector<2x256xf32>
    %19 = math.exp %18 : vector<2x256xf32>
    %cst_13 = arith.constant 1.000000e+00 : f32
    %20 = vector.broadcast %cst_13 : f32 to vector<2x256xf32>
    %21 = arith.addf %20, %19 : vector<2x256xf32>
    %22 = arith.divf %20, %21 : vector<2x256xf32>
    %23 = vector.shape_cast %22 : vector<2x256xf32> to vector<2x1x256xf32>
    %24 = vector.broadcast %23 : vector<2x1x256xf32> to vector<2x4x256xf32>
    %25 = arith.mulf %0, %24 : vector<2x4x256xf32>
    %c0_14 = arith.constant 0 : index
    %c0_15 = arith.constant 0 : index
    %c0_16 = arith.constant 0 : index
    %26 = vector.load %arg4[%c0_14, %c0_15, %c0_16] : memref<2x4x256xf32, #tpu.memory_space<vmem>>, vector<2x4x256xf32>
    tpu.vector_store %arg4[%c0_14, %c0_15, %c0_16], %25 {strides = array<i32>} : memref<2x4x256xf32, #tpu.memory_space<vmem>>, vector<2x4x256xf32>,
    return
  }
  func.func @transform_0(%arg0: i32) -> i32 {
    %c0_i32 = arith.constant 0 : i32
    %c0_i32_0 = arith.constant 0 : i32
    return %c0_i32 : i32
  }
  func.func @transform_1(%arg0: i32) -> (i32, i32, i32) {
    %c0_i32 = arith.constant 0 : i32
    %c0_i32_0 = arith.constant 0 : i32
    %c0_i32_1 = arith.constant 0 : i32
    %c0_i32_2 = arith.constant 0 : i32
    return %c0_i32, %c0_i32_0, %c0_i32_1 : i32, i32, i32
  }
  func.func @transform_2(%arg0: i32) -> (i32, i32, i32) {
    %c0_i32 = arith.constant 0 : i32
    %c0_i32_0 = arith.constant 0 : i32
    %c0_i32_1 = arith.constant 0 : i32
    return %arg0, %c0_i32, %c0_i32_0 : i32, i32, i32
  }
  func.func @transform_3(%arg0: i32) -> (i32, i32, i32) {
    %c0_i32 = arith.constant 0 : i32
    %c0_i32_0 = arith.constant 0 : i32
    %c0_i32_1 = arith.constant 0 : i32
    return %arg0, %c0_i32, %c0_i32_0 : i32, i32, i32
  }
}

</mosaic_0001>

<llo_original>
// kernel: tpu_custom_call.1
$region0: #{tpu_custom_call.1}
  #allocation0 [shape = 'u32[]', space=smem, size = 0x4, offset = 0x4, fixed_abs, tag = 'smem constant byte address 0x4 - core index']
  #allocation1 [shape = 'u32[144,128]{1,0:T(1,128)}', space=vmem, size = 0x12000, scoped, tag = 'internal scratch']
  %s0 = inlined_call_operand.hbm [shape: f32[2], index: 0, kind: input, shape index: {}]
  %s1 = inlined_call_operand.hbm [shape: f32[2,256,256], index: 1, kind: input, shape index: {}]
  %s2 = inlined_call_operand.hbm [shape: f32[2,4,256], index: 2, kind: input, shape index: {}]
  %s3 = inlined_call_operand.hbm [shape: f32[2,4,256], index: 3, kind: output, shape index: {}]
  %s4 = sld [smem:[#allocation0]]
  $region34: #{tpu_custom_call.1} parent=0
    _
  %s6 = ssub.s32 1, %s4
  %s7 = scalar_select 0, %s6, %s4
  $region1: #{tpu_custom_call.1} parent=0
    #allocation2 [shape = 'u8[512]{0}', space=smem, size = 0x200, scoped, tag = 'input window, operand 0, single buffered']
    #allocation3 [shape = 's32[1]{0}', space=sflag, size = 0x4, scoped, tag = 'scoped memory for tpu_custom_call.1']
    #allocation4 [shape = 's32[1]{0}', space=sflag, size = 0x4, scoped, tag = 'scoped memory for tpu_custom_call.1']
    #allocation5 [shape = 's32[1]{0}', space=sflag, size = 0x4, scoped, tag = 'scoped memory for tpu_custom_call.1']
    #allocation6 [shape = 'u8[524288]{0}', space=vmem, size = 0x80000, scoped, tag = 'input window, operand 1, single buffered']
    #allocation7 [shape = 'u8[8192]{0}', space=vmem, size = 0x2000, scoped, tag = 'input window, operand 2, single buffered']
    #allocation8 [shape = 's32[1]{0}', space=sflag, size = 0x4, scoped, tag = 'scoped memory for tpu_custom_call.1']
    #allocation9 [shape = 'u8[8192]{0}', space=vmem, size = 0x2000, scoped, tag = 'output window, operand 0, single buffered']
    %8 = vsyncpa [#allocation5], 0
    %9 = vsyncpa [#allocation3], 0
    %10 = vsyncpa [#allocation8], 0
    %11 = vsyncpa [#allocation4], 0
    // Predicated region
    $region2: #{tpu_custom_call.1} parent=1 // pred_check
      _
    $region3: #{tpu_custom_call.1} parent=1 // pred_check_branch
      %13 = sbr.rel (0) target = $region5
    $region4: #{tpu_custom_call.1} parent=1 // pred_region
      %s15 = ssub.s32 16, 16
      %16 = vsyncadd [#allocation5], %s15
      %19 = dma.hbm_to_smem %s0, 16, [#allocation2], [#allocation5]
    $region5: #{tpu_custom_call.1} parent=1 // pred_fallthru
      _
    // Predicated region
    $region6: #{tpu_custom_call.1} parent=1 // pred_check
      _
    $region7: #{tpu_custom_call.1} parent=1 // pred_check_branch
      %21 = sbr.rel (0) target = $region9
    $region8: #{tpu_custom_call.1} parent=1 // pred_region
      %s23 = ssub.s32 16384, 16384
      %24 = vsyncadd [#allocation3], %s23
      %s25 = sshll.u32 [#allocation6], 4
      %s26 = int_to_ptr.vmem [resolvable:$true] %s25
      %31 = dma.hbm_to_vmem [thread:$0]  %s1, 16384, %s26, [#allocation3], 256, 256, 16
    $region9: #{tpu_custom_call.1} parent=1 // pred_fallthru
      _
    // Predicated region
    $region10: #{tpu_custom_call.1} parent=1 // pred_check
      _
    $region11: #{tpu_custom_call.1} parent=1 // pred_check_branch
      %33 = sbr.rel (0) target = $region13
    $region12: #{tpu_custom_call.1} parent=1 // pred_region
      %s35 = ssub.s32 256, 256
      %36 = vsyncadd [#allocation8], %s35
      %s37 = sshll.u32 [#allocation7], 4
      %s38 = int_to_ptr.vmem [resolvable:$true] %s37
      %43 = dma.hbm_to_vmem [thread:$0]  %s2, 256, %s38, [#allocation8], 128, 128, 8
    $region13: #{tpu_custom_call.1} parent=1 // pred_fallthru
      _
    // Predicated region
    $region14: #{tpu_custom_call.1} parent=1 // pred_check
      _
    $region15: #{tpu_custom_call.1} parent=1 // pred_check_branch
      %45 = sbr.rel (0) target = $region17
    $region16: #{tpu_custom_call.1} parent=1 // pred_region
      %46 = dma.done [#allocation5], 16
    $region17: #{tpu_custom_call.1} parent=1 // pred_fallthru
      _
    // Predicated region
    $region18: #{tpu_custom_call.1} parent=1 // pred_check
      _
    $region19: #{tpu_custom_call.1} parent=1 // pred_check_branch
      %48 = sbr.rel (0) target = $region21
    $region20: #{tpu_custom_call.1} parent=1 // pred_region
      %49 = dma.done [#allocation3], 16384
    $region21: #{tpu_custom_call.1} parent=1 // pred_fallthru
      _
    // Predicated region
    $region22: #{tpu_custom_call.1} parent=1 // pred_check
      _
    $region23: #{tpu_custom_call.1} parent=1 // pred_check_branch
      %51 = sbr.rel (0) target = $region25
    $region24: #{tpu_custom_call.1} parent=1 // pred_region
      %52 = dma.done [#allocation8], 256
    $region25: #{tpu_custom_call.1} parent=1 // pred_fallthru
      _
    %53 = sfence
    %v54 = vld [vmem:[#allocation7] sm:$0xff]
    %v55 = vld [vmem:[#allocation7 + $0x8] sm:$0xff]
    %v58 = vcombine.high %v54, %v54
    %v59 = vcombine.high %v55, %v55
    %vm62 = vcmask 1043456
    %v63 = vsel %vm62, %v54, -inf
    %v64 = vrot.slane %v63, 4
    %v65 = vmax.f32 %v63, %v64
    %v66 = vrot.slane %v65, 2
    %v67 = vmax.f32 %v65, %v66
    %v68 = vrot.slane %v67, 1
    %v69 = vmax.f32 %v67, %v68
    %v70 = vsel %vm62, %v58, -inf
    %v71 = vrot.slane %v70, 4
    %v72 = vmax.f32 %v70, %v71
    %v73 = vrot.slane %v72, 2
    %v74 = vmax.f32 %v72, %v73
    %v75 = vrot.slane %v74, 1
    %v76 = vmax.f32 %v74, %v75
    %v77 = vsel %vm62, %v55, -inf
    %v78 = vrot.slane %v77, 4
    %v79 = vmax.f32 %v77, %v78
    %v80 = vrot.slane %v79, 2
    %v81 = vmax.f32 %v79, %v80
    %v82 = vrot.slane %v81, 1
    %v83 = vmax.f32 %v81, %v82
    %v84 = vsel %vm62, %v59, -inf
    %v85 = vrot.slane %v84, 4
    %v86 = vmax.f32 %v84, %v85
    %v87 = vrot.slane %v86, 2
    %v88 = vmax.f32 %v86, %v87
    %v89 = vrot.slane %v88, 1
    %v90 = vmax.f32 %v88, %v89
    %v91 = vsel %vm62, %v54, 0.0
    %v92 = vrot.slane %v91, 4
    %v93 = vadd.f32 %v91, %v92
    %v94 = vrot.slane %v93, 2
    %v95 = vadd.f32 %v93, %v94
    %v96 = vrot.slane %v95, 1
    %v97 = vadd.f32 %v95, %v96
    %v98 = vsel %vm62, %v58, 0.0
    %v99 = vrot.slane %v98, 4
    %v100 = vadd.f32 %v98, %v99
    %v101 = vrot.slane %v100, 2
    %v102 = vadd.f32 %v100, %v101
    %v103 = vrot.slane %v102, 1
    %v104 = vadd.f32 %v102, %v103
    %v105 = vsel %vm62, %v55, 0.0
    %v106 = vrot.slane %v105, 4
    %v107 = vadd.f32 %v105, %v106
    %v108 = vrot.slane %v107, 2
    %v109 = vadd.f32 %v107, %v108
    %v110 = vrot.slane %v109, 1
    %v111 = vadd.f32 %v109, %v110
    %v112 = vsel %vm62, %v59, 0.0
    %v113 = vrot.slane %v112, 4
    %v114 = vadd.f32 %v112, %v113
    %v115 = vrot.slane %v114, 2
    %v116 = vadd.f32 %v114, %v115
    %v117 = vrot.slane %v116, 1
    %v118 = vadd.f32 %v116, %v117
    %v119 = vrcp.pop 4.0
    %v120 = vmul.f32 %v97, %v119
    %v121 = vmul.f32 %v104, %v119
    %v122 = vmul.f32 %v111, %v119
    %v123 = vmul.f32 %v118, %v119
    %v124 = vld [vmem:[#allocation6] sm:$0xff]
    %v125 = vld [vmem:[#allocation6 + $0x8] sm:$0xff]
    %v126 = vld [vmem:[#allocation6 + $0x10] sm:$0xff]
    %v127 = vld [vmem:[#allocation6 + $0x18] sm:$0xff]
    %v128 = vld [vmem:[#allocation6 + $0x20] sm:$0xff]
    %v129 = vld [vmem:[#allocation6 + $0x28] sm:$0xff]
    %v130 = vld [vmem:[#allocation6 + $0x30] sm:$0xff]
    %v131 = vld [vmem:[#allocation6 + $0x38] sm:$0xff]
    %v132 = vld [vmem:[#allocation6 + $0x40] sm:$0xff]
    %v133 = vld [vmem:[#allocation6 + $0x48] sm:$0xff]
    %v134 = vld [vmem:[#allocation6 + $0x50] sm:$0xff]
    %v135 = vld [vmem:[#allocation6 + $0x58] sm:$0xff]
    %v136 = vld [vmem:[#allocation6 + $0x60] sm:$0xff]
    %v137 = vld [vmem:[#allocation6 + $0x68] sm:$0xff]
    %v138 = vld [vmem:[#allocation6 + $0x70] sm:$0xff]
    %v139 = vld [vmem:[#allocation6 + $0x78] sm:$0xff]
    %v140 = vld [vmem:[#allocation6 + $0x80] sm:$0xff]
    %v141 = vld [vmem:[#allocation6 + $0x88] sm:$0xff]
    %v142 = vld [vmem:[#allocation6 + $0x90] sm:$0xff]
    %v143 = vld [vmem:[#allocation6 + $0x98] sm:$0xff]
    %v144 = vld [vmem:[#allocation6 + $0xa0] sm:$0xff]
    %v145 = vld [vmem:[#allocation6 + $0xa8] sm:$0xff]
    %v146 = vld [vmem:[#allocation6 + $0xb0] sm:$0xff]
    %v147 = vld [vmem:[#allocation6 + $0xb8] sm:$0xff]
    %v148 = vld [vmem:[#allocation6 + $0xc0] sm:$0xff]
    %v149 = vld [vmem:[#allocation6 + $0xc8] sm:$0xff]
    %v150 = vld [vmem:[#allocation6 + $0xd0] sm:$0xff]
    %v151 = vld [vmem:[#allocation6 + $0xd8] sm:$0xff]
    %v152 = vld [vmem:[#allocation6 + $0xe0] sm:$0xff]
    %v153 = vld [vmem:[#allocation6 + $0xe8] sm:$0xff]
    %v154 = vld [vmem:[#allocation6 + $0xf0] sm:$0xff]
    %v155 = vld [vmem:[#allocation6 + $0xf8] sm:$0xff]
    %v156 = vld [vmem:[#allocation6 + $0x100] sm:$0xff]
    %v157 = vld [vmem:[#allocation6 + $0x108] sm:$0xff]
    %v158 = vld [vmem:[#allocation6 + $0x110] sm:$0xff]
    %v159 = vld [vmem:[#allocation6 + $0x118] sm:$0xff]
    %v160 = vld [vmem:[#allocation6 + $0x120] sm:$0xff]
    %v161 = vld [vmem:[#allocation6 + $0x128] sm:$0xff]
    %v162 = vld [vmem:[#allocation6 + $0x130] sm:$0xff]
    %v163 = vld [vmem:[#allocation6 + $0x138] sm:$0xff]
    %v164 = vld [vmem:[#allocation6 + $0x140] sm:$0xff]
    %v165 = vld [vmem:[#allocation6 + $0x148] sm:$0xff]
    %v166 = vld [vmem:[#allocation6 + $0x150] sm:$0xff]
    %v167 = vld [vmem:[#allocation6 + $0x158] sm:$0xff]
    %v168 = vld [vmem:[#allocation6 + $0x160] sm:$0xff]
    %v169 = vld [vmem:[#allocation6 + $0x168] sm:$0xff]
    %v170 = vld [vmem:[#allocation6 + $0x170] sm:$0xff]
    %v171 = vld [vmem:[#allocation6 + $0x178] sm:$0xff]
    %v172 = vld [vmem:[#allocation6 + $0x180] sm:$0xff]
    %v173 = vld [vmem:[#allocation6 + $0x188] sm:$0xff]
    %v174 = vld [vmem:[#allocation6 + $0x190] sm:$0xff]
    %v175 = vld [vmem:[#allocation6 + $0x198] sm:$0xff]
    %v176 = vld [vmem:[#allocation6 + $0x1a0] sm:$0xff]
    %v177 = vld [vmem:[#allocation6 + $0x1a8] sm:$0xff]
    %v178 = vld [vmem:[#allocation6 + $0x1b0] sm:$0xff]
    %v179 = vld [vmem:[#allocation6 + $0x1b8] sm:$0xff]
    %v180 = vld [vmem:[#allocation6 + $0x1c0] sm:$0xff]
    %v181 = vld [vmem:[#allocation6 + $0x1c8] sm:$0xff]
    %v182 = vld [vmem:[#allocation6 + $0x1d0] sm:$0xff]
    %v183 = vld [vmem:[#allocation6 + $0x1d8] sm:$0xff]
    %v184 = vld [vmem:[#allocation6 + $0x1e0] sm:$0xff]
    %v185 = vld [vmem:[#allocation6 + $0x1e8] sm:$0xff]
    %v186 = vld [vmem:[#allocation6 + $0x1f0] sm:$0xff]
    %v187 = vld [vmem:[#allocation6 + $0x1f8] sm:$0xff]
    %s188 = scalar_lea.vmem [#allocation6], 512
    %v189 = vld [vmem:[%s188] sm:$0xff]
    %v190 = vld [vmem:[%s188 + $0x8] sm:$0xff]
    %v191 = vld [vmem:[%s188 + $0x10] sm:$0xff]
    %v192 = vld [vmem:[%s188 + $0x18] sm:$0xff]
    %v193 = vld [vmem:[%s188 + $0x20] sm:$0xff]
    %v194 = vld [vmem:[%s188 + $0x28] sm:$0xff]
    %v195 = vld [vmem:[%s188 + $0x30] sm:$0xff]
    %v196 = vld [vmem:[%s188 + $0x38] sm:$0xff]
    %v197 = vld [vmem:[%s188 + $0x40] sm:$0xff]
    %v198 = vld [vmem:[%s188 + $0x48] sm:$0xff]
    %v199 = vld [vmem:[%s188 + $0x50] sm:$0xff]
    %v200 = vld [vmem:[%s188 + $0x58] sm:$0xff]
    %v201 = vld [vmem:[%s188 + $0x60] sm:$0xff]
    %v202 = vld [vmem:[%s188 + $0x68] sm:$0xff]
    %v203 = vld [vmem:[%s188 + $0x70] sm:$0xff]
    %v204 = vld [vmem:[%s188 + $0x78] sm:$0xff]
    %v205 = vld [vmem:[%s188 + $0x80] sm:$0xff]
    %v206 = vld [vmem:[%s188 + $0x88] sm:$0xff]
    %v207 = vld [vmem:[%s188 + $0x90] sm:$0xff]
    %v208 = vld [vmem:[%s188 + $0x98] sm:$0xff]
    %v209 = vld [vmem:[%s188 + $0xa0] sm:$0xff]
    %v210 = vld [vmem:[%s188 + $0xa8] sm:$0xff]
    %v211 = vld [vmem:[%s188 + $0xb0] sm:$0xff]
    %v212 = vld [vmem:[%s188 + $0xb8] sm:$0xff]
    %v213 = vld [vmem:[%s188 + $0xc0] sm:$0xff]
    %v214 = vld [vmem:[%s188 + $0xc8] sm:$0xff]
    %v215 = vld [vmem:[%s188 + $0xd0] sm:$0xff]
    %v216 = vld [vmem:[%s188 + $0xd8] sm:$0xff]
    %v217 = vld [vmem:[%s188 + $0xe0] sm:$0xff]
    %v218 = vld [vmem:[%s188 + $0xe8] sm:$0xff]
    %v219 = vld [vmem:[%s188 + $0xf0] sm:$0xff]
    %v220 = vld [vmem:[%s188 + $0xf8] sm:$0xff]
    %v221 = vld [vmem:[%s188 + $0x100] sm:$0xff]
    %v222 = vld [vmem:[%s188 + $0x108] sm:$0xff]
    %v223 = vld [vmem:[%s188 + $0x110] sm:$0xff]
    %v224 = vld [vmem:[%s188 + $0x118] sm:$0xff]
    %v225 = vld [vmem:[%s188 + $0x120] sm:$0xff]
    %v226 = vld [vmem:[%s188 + $0x128] sm:$0xff]
    %v227 = vld [vmem:[%s188 + $0x130] sm:$0xff]
    %v228 = vld [vmem:[%s188 + $0x138] sm:$0xff]
    %v229 = vld [vmem:[%s188 + $0x140] sm:$0xff]
    %v230 = vld [vmem:[%s188 + $0x148] sm:$0xff]
    %v231 = vld [vmem:[%s188 + $0x150] sm:$0xff]
    %v232 = vld [vmem:[%s188 + $0x158] sm:$0xff]
    %v233 = vld [vmem:[%s188 + $0x160] sm:$0xff]
    %v234 = vld [vmem:[%s188 + $0x168] sm:$0xff]
    %v235 = vld [vmem:[%s188 + $0x170] sm:$0xff]
    %v236 = vld [vmem:[%s188 + $0x178] sm:$0xff]
    %v237 = vld [vmem:[%s188 + $0x180] sm:$0xff]
    %v238 = vld [vmem:[%s188 + $0x188] sm:$0xff]
    %v239 = vld [vmem:[%s188 + $0x190] sm:$0xff]
    %v240 = vld [vmem:[%s188 + $0x198] sm:$0xff]
    %v241 = vld [vmem:[%s188 + $0x1a0] sm:$0xff]
    %v242 = vld [vmem:[%s188 + $0x1a8] sm:$0xff]
    %v243 = vld [vmem:[%s188 + $0x1b0] sm:$0xff]
    %v244 = vld [vmem:[%s188 + $0x1b8] sm:$0xff]
    %v245 = vld [vmem:[%s188 + $0x1c0] sm:$0xff]
    %v246 = vld [vmem:[%s188 + $0x1c8] sm:$0xff]
    %v247 = vld [vmem:[%s188 + $0x1d0] sm:$0xff]
    %v248 = vld [vmem:[%s188 + $0x1d8] sm:$0xff]
    %v249 = vld [vmem:[%s188 + $0x1e0] sm:$0xff]
    %v250 = vld [vmem:[%s188 + $0x1e8] sm:$0xff]
    %v251 = vld [vmem:[%s188 + $0x1f0] sm:$0xff]
    %v252 = vld [vmem:[%s188 + $0x1f8] sm:$0xff]
    %vm257 = vcmask 1041409
    %v258 = vsel %vm257, %v122, %v120
    %v259 = vsel %vm257, %v123, %v121
    %262 = vmatprep.subr.mxu0 %v190
    %263 = vmatpush1.msra.mxu0 %v189
    %264 = vmatprep.subr.mxu0 %v192
    %265 = vmatpush1.msra.mxu0 %v191
    %266 = vmatprep.subr.mxu0 %v194
    %267 = vmatpush1.msra.mxu0 %v193
    %268 = vmatprep.subr.mxu0 %v196
    %269 = vmatpush1.msra.mxu0 %v195
    %270 = vmatprep.subr.mxu0 %v198
    %271 = vmatpush1.msra.mxu0 %v197
    %272 = vmatprep.subr.mxu0 %v200
    %273 = vmatpush1.msra.mxu0 %v199
    %274 = vmatprep.subr.mxu0 %v202
    %275 = vmatpush1.msra.mxu0 %v201
    %276 = vmatprep.subr.mxu0 %v204
    %277 = vmatpush1.msra.mxu0 %v203
    %278 = vmatprep.subr.mxu0 %v206
    %279 = vmatpush1.msra.mxu0 %v205
    %280 = vmatprep.subr.mxu0 %v208
    %281 = vmatpush1.msra.mxu0 %v207
    %282 = vmatprep.subr.mxu0 %v210
    %283 = vmatpush1.msra.mxu0 %v209
    %284 = vmatprep.subr.mxu0 %v212
    %285 = vmatpush1.msra.mxu0 %v211
    %286 = vmatprep.subr.mxu0 %v214
    %287 = vmatpush1.msra.mxu0 %v213
    %288 = vmatprep.subr.mxu0 %v216
    %289 = vmatpush1.msra.mxu0 %v215
    %290 = vmatprep.subr.mxu0 %v218
    %291 = vmatpush1.msra.mxu0 %v217
    %292 = vmatprep.subr.mxu0 %v220
    %293 = vmatpush1.msra.mxu0 %v219
    %294 = vmatprep.subr.mxu0 %v222
    %295 = vmatpush1.msra.mxu0 %v221
    %296 = vmatprep.subr.mxu0 %v224
    %297 = vmatpush1.msra.mxu0 %v223
    %298 = vmatprep.subr.mxu0 %v226
    %299 = vmatpush1.msra.mxu0 %v225
    %300 = vmatprep.subr.mxu0 %v228
    %301 = vmatpush1.msra.mxu0 %v227
    %302 = vmatprep.subr.mxu0 %v230
    %303 = vmatpush1.msra.mxu0 %v229
    %304 = vmatprep.subr.mxu0 %v232
    %305 = vmatpush1.msra.mxu0 %v231
    %306 = vmatprep.subr.mxu0 %v234
    %307 = vmatpush1.msra.mxu0 %v233
    %308 = vmatprep.subr.mxu0 %v236
    %309 = vmatpush1.msra.mxu0 %v235
    %310 = vmatprep.subr.mxu0 %v238
    %311 = vmatpush1.msra.mxu0 %v237
    %312 = vmatprep.subr.mxu0 %v240
    %313 = vmatpush1.msra.mxu0 %v239
    %314 = vmatprep.subr.mxu0 %v242
    %315 = vmatpush1.msra.mxu0 %v241
    %316 = vmatprep.subr.mxu0 %v244
    %317 = vmatpush1.msra.mxu0 %v243
    %318 = vmatprep.subr.mxu0 %v246
    %319 = vmatpush1.msra.mxu0 %v245
    %320 = vmatprep.subr.mxu0 %v248
    %321 = vmatpush1.msra.mxu0 %v247
    %322 = vmatprep.subr.mxu0 %v250
    %323 = vmatpush1.msra.mxu0 %v249
    %324 = vmatprep.subr.mxu0 %v252
    %325 = vmatpush1.msra.mxu0 %v251
    %326 = vmatprep.mubr.f32.mxu0 %v259
    %327 = vmatmul.mubr.f32.gmra.mrb[0].mxu0 %v258
    %v328 = vpop.f32.mrb[0].mxu0
    %v329 = vadd.f32 0.0, %v328
    %v330 = vpop.f32.mrb[0].mxu0
    %v331 = vadd.f32 0.0, %v330
    %332 = vdwg.mxu0
    %v337 = vsel %vm257, %v83, %v69
    %v338 = vsel %vm257, %v90, %v76
    %341 = vmatprep.subr.mxu0 %v125
    %342 = vmatpush1.msra.mxu0 %v124
    %343 = vmatprep.subr.mxu0 %v127
    %344 = vmatpush1.msra.mxu0 %v126
    %345 = vmatprep.subr.mxu0 %v129
    %346 = vmatpush1.msra.mxu0 %v128
    %347 = vmatprep.subr.mxu0 %v131
    %348 = vmatpush1.msra.mxu0 %v130
    %349 = vmatprep.subr.mxu0 %v133
    %350 = vmatpush1.msra.mxu0 %v132
    %351 = vmatprep.subr.mxu0 %v135
    %352 = vmatpush1.msra.mxu0 %v134
    %353 = vmatprep.subr.mxu0 %v137
    %354 = vmatpush1.msra.mxu0 %v136
    %355 = vmatprep.subr.mxu0 %v139
    %356 = vmatpush1.msra.mxu0 %v138
    %357 = vmatprep.subr.mxu0 %v141
    %358 = vmatpush1.msra.mxu0 %v140
    %359 = vmatprep.subr.mxu0 %v143
    %360 = vmatpush1.msra.mxu0 %v142
    %361 = vmatprep.subr.mxu0 %v145
    %362 = vmatpush1.msra.mxu0 %v144
    %363 = vmatprep.subr.mxu0 %v147
    %364 = vmatpush1.msra.mxu0 %v146
    %365 = vmatprep.subr.mxu0 %v149
    %366 = vmatpush1.msra.mxu0 %v148
    %367 = vmatprep.subr.mxu0 %v151
    %368 = vmatpush1.msra.mxu0 %v150
    %369 = vmatprep.subr.mxu0 %v153
    %370 = vmatpush1.msra.mxu0 %v152
    %371 = vmatprep.subr.mxu0 %v155
    %372 = vmatpush1.msra.mxu0 %v154
    %373 = vmatprep.subr.mxu0 %v157
    %374 = vmatpush1.msra.mxu0 %v156
    %375 = vmatprep.subr.mxu0 %v159
    %376 = vmatpush1.msra.mxu0 %v158
    %377 = vmatprep.subr.mxu0 %v161
    %378 = vmatpush1.msra.mxu0 %v160
    %379 = vmatprep.subr.mxu0 %v163
    %380 = vmatpush1.msra.mxu0 %v162
    %381 = vmatprep.subr.mxu0 %v165
    %382 = vmatpush1.msra.mxu0 %v164
    %383 = vmatprep.subr.mxu0 %v167
    %384 = vmatpush1.msra.mxu0 %v166
    %385 = vmatprep.subr.mxu0 %v169
    %386 = vmatpush1.msra.mxu0 %v168
    %387 = vmatprep.subr.mxu0 %v171
    %388 = vmatpush1.msra.mxu0 %v170
    %389 = vmatprep.subr.mxu0 %v173
    %390 = vmatpush1.msra.mxu0 %v172
    %391 = vmatprep.subr.mxu0 %v175
    %392 = vmatpush1.msra.mxu0 %v174
    %393 = vmatprep.subr.mxu0 %v177
    %394 = vmatpush1.msra.mxu0 %v176
    %395 = vmatprep.subr.mxu0 %v179
    %396 = vmatpush1.msra.mxu0 %v178
    %397 = vmatprep.subr.mxu0 %v181
    %398 = vmatpush1.msra.mxu0 %v180
    %399 = vmatprep.subr.mxu0 %v183
    %400 = vmatpush1.msra.mxu0 %v182
    %401 = vmatprep.subr.mxu0 %v185
    %402 = vmatpush1.msra.mxu0 %v184
    %403 = vmatprep.subr.mxu0 %v187
    %404 = vmatpush1.msra.mxu0 %v186
    %405 = vmatprep.mubr.f32.mxu0 %v338
    %406 = vmatmul.mubr.f32.gmra.mrb[0].mxu0 %v337
    %v407 = vpop.f32.mrb[0].mxu0
    %v408 = vadd.f32 %v329, %v407
    %v409 = vpop.f32.mrb[0].mxu0
    %v410 = vadd.f32 %v331, %v409
    %411 = vdwg.mxu0
    %s412 = sld [smem:[#allocation2]]
    %v413 = vstv %s412
    %v414 = vmul.f32 %v408, %v413
    %v415 = vmul.f32 %v410, %v413
    %s416 = sld [smem:[#allocation2 + $0x1]]
    %v417 = vstv %s416
    %v418 = vadd.f32 %v414, %v417
    %v419 = vadd.f32 %v415, %v417
    %v420 = vxor.u32 %v418, 2147483648
    %v421 = vxor.u32 %v419, 2147483648
    %v422 = vmul.f32 %v420, 1.442695
    %v423 = vpow.pop %v422
    %v424 = vmul.f32 %v421, 1.442695
    %v425 = vpow.pop %v424
    %v426 = vadd.f32 %v423, 1.0
    %v427 = vadd.f32 %v425, 1.0
    %v428 = vrcp.pop %v426
    %v429 = vmul.f32 1.0, %v428
    %v430 = vrcp.pop %v427
    %v431 = vmul.f32 1.0, %v430
    %v434 = vcombine.low %v429, %v431
    %v436 = vunpack.c.l.s4 1966171168
    %v437 = vunpack.c.0.s8 %v436
    %v438 = vlaneseq
    %v439 = vshrl.u32 %v438, 7
    %v440 = vsub.s32 %v437, %v439
    %v441 = vrot.slane %v434, %v440
    %v442 = vcombine.high %v441, %v441
    %v444 = vunpack.c.l.s4 1966171168
    %v445 = vunpack.c.0.s8 %v444
    %v446 = vlaneseq
    %v447 = vshrl.u32 %v446, 7
    %v448 = vsub.s32 %v445, %v447
    %v449 = vrot.slane %v441, %v448
    %v451 = vunpack.c.l.s4 1966171168
    %v452 = vunpack.c.0.s8 %v451
    %v453 = vlaneseq
    %v454 = vshrl.u32 %v453, 7
    %v455 = vsub.s32 %v452, %v454
    %v456 = vrot.slane %v442, %v455
    %v457 = vlaneseq
    %v458 = vshrl.u32 %v457, 7
    %v459 = vsub.s32 0, %v458
    %v460 = vrot.slane %v449, %v459
    %v461 = vlaneseq
    %v462 = vshrl.u32 %v461, 7
    %v463 = vsub.s32 1, %v462
    %v464 = vrot.slane %v449, %v463
    %v465 = vlaneseq
    %v466 = vshrl.u32 %v465, 7
    %v467 = vsub.s32 0, %v466
    %v468 = vrot.slane %v456, %v467
    %v469 = vlaneseq
    %v470 = vshrl.u32 %v469, 7
    %v471 = vsub.s32 1, %v470
    %v472 = vrot.slane %v456, %v471
    %v473 = vcombine.low %v460, %v464
    %v474 = vcombine.low %v468, %v472
    %v477 = vmul.f32 %v54, %v473
    %v478 = vmul.f32 %v55, %v474
    %479 = vst [vmem:[#allocation9] sm:$0xff] %v477
    %480 = vst [vmem:[#allocation9 + $0x8] sm:$0xff] %v478
    // Predicated region
    $region26: #{tpu_custom_call.1} parent=1 // pred_check
      _
    $region27: #{tpu_custom_call.1} parent=1 // pred_check_branch
      %482 = sbr.rel (0) target = $region29
    $region28: #{tpu_custom_call.1} parent=1 // pred_region
      %s484 = ssub.s32 256, 256
      %485 = vsyncadd [#allocation4], %s484
      %s486 = sshll.u32 [#allocation9], 4
      %s487 = int_to_ptr.vmem [resolvable:$true] %s486
      %492 = dma.vmem_to_hbm [thread:$0]  %s487, 256, %s3, [#allocation4], 128, 128, 8
    $region29: #{tpu_custom_call.1} parent=1 // pred_fallthru
      _
    // Predicated region
    $region30: #{tpu_custom_call.1} parent=1 // pred_check
      _
    $region31: #{tpu_custom_call.1} parent=1 // pred_check_branch
      %494 = sbr.rel (0) target = $region33
    $region32: #{tpu_custom_call.1} parent=1 // pred_region
      %495 = dma.done [#allocation4], 256
    $region33: #{tpu_custom_call.1} parent=1 // pred_fallthru
      _
    %496 = vsyncpa [#allocation3], 1
    %497 = vsyncpa [#allocation8], 1
    %498 = vsyncpa [#allocation4], 1
    %499 = vsyncpa [#allocation5], 1

</llo_original>
